<compile_context>
chip_gen: v6e
topology: v6e:2x2x1
jax: 0.10.0
libtpu: 0.0.40
codegen_flags: <defaults>
</compile_context>

<pallas_src>
import functools

import jax
import jax.numpy as jnp
from jax import lax
from jax.experimental import pallas as pl
from jax.experimental.pallas import tpu as pltpu


def tablock_kernel(n_valid, c_tile, xf_ref, wq_ref, bq_ref, wk_ref, bk_ref,
                   wv_ref, bv_ref, xr_ref, o_ref, k_sc, v_sc):
    """One (batch b, C-tile j) grid step.

    xf_ref : (C, n_pad) bf16      full x block for this batch (single-buffered)
    w*_ref : (n_pad, n_pad) bf16  pre-transposed weights (norm folded into wq)
    b*_ref : (1, n_pad) f32       biases (norm folded into bq)
    xr_ref : (N, c_tile)          residual tile of x.reshape(B, N, C)
    o_ref  : (N, c_tile)          y^T tile + residual (output laid out (B, N, C))
    k_sc/v_sc : (C, n_pad) bf16   VMEM scratch caching k / v across the j axis
    """
    f32 = jnp.float32
    bf16 = jnp.bfloat16
    j = pl.program_id(1)

    # k / v are identical for every C-tile of this batch: compute them once at
    # j == 0 and cache them (already bf16) in VMEM scratch.  Grid axis 1 is
    # marked "arbitrary" so the scratch persists across j.
    @pl.when(j == 0)
    def _():
        xf = xf_ref[...]
        k = jnp.dot(xf, wk_ref[...], preferred_element_type=f32) + bk_ref[...]
        k_sc[...] = k.astype(bf16)
        v = jnp.dot(xf, wv_ref[...], preferred_element_type=f32) + bv_ref[...]
        v_sc[...] = v.astype(bf16)

    # Query rows of this C-tile come straight from the resident xf block
    # (no separate, double-buffered xq input stream).
    row0 = pl.multiple_of(j * c_tile, c_tile)
    xq = xf_ref[pl.ds(row0, c_tile), :]                       # (c_tile, n_pad) bf16

    # q linear (norm_fact pre-folded into wq / bq); cast to bf16 immediately
    # so the f32 temporary dies before the big matmuls.
    q = (jnp.dot(xq, wq_ref[...], preferred_element_type=f32)
         + bq_ref[...]).astype(bf16)                          # (c_tile, n_pad)

    # scores = q @ k^T, contracting the N axis directly (no materialized k^T).
    scores = lax.dot_general(
        q, k_sc[...],
        dimension_numbers=(((1,), (1,)), ((), ())),
        preferred_element_type=f32)                           # (c_tile, C)

    # Softmax over the last axis, kept in f32; the reciprocal goes to the EUP.
    scores = scores - jnp.max(scores, axis=-1, keepdims=True)
    p = jnp.exp(scores)
    attn = (p * pl.reciprocal(jnp.sum(p, axis=-1, keepdims=True),
                              approx=True)).astype(bf16)      # (c_tile, C)

    # y^T = (attn @ v)^T straight off the MXU: contract v's C axis with attn's
    # last axis -> (n_pad, c_tile).  No XLU transpose; PyTorch's
    # transpose(1,2).reshape becomes a free reinterpretation because the
    # output is written in (B, N, C) layout.
    y_t = lax.dot_general(
        v_sc[...], attn,
        dimension_numbers=(((0,), (1,)), ((), ())),
        preferred_element_type=f32)                           # (n_pad, c_tile)

    # Rows >= n_valid of y^T are exactly zero (zero-padded weight columns and
    # biases); drop them and add the residual in the (N, C) layout.
    # TODO(synk): proj_drop = nn.Dropout(0.1) is identity in eval mode; not applied.
    o_ref[...] = (y_t[:n_valid, :]
                  + xr_ref[...].astype(f32)).astype(o_ref.dtype)


def _round_up(v, m):
    return (v + m - 1) // m * m


def _tpu_vmem_capacity_bytes():
    # Chip-aware VMEM budget (v5e / v6e: 128 MiB; v7x: 64 MiB per TensorCore).
    # Fall back to the conservative 64 MiB if the query is unavailable.
    try:
        return int(pltpu.get_tpu_info().vmem_capacity_bytes)
    except Exception:
        return 64 * 2**20


def _pick_c_tile(C, vmem_cap):
    # 128-wide C tiles match the MXU on v5e / v7x and keep the resident set
    # small under v7x's 64 MiB VMEM; 256 is profitable on 128-MiB parts (fewer
    # ~0.35 us grid steps).  Tiny demo shapes just use the full C.
    widest = 256 if vmem_cap >= (96 << 20) else 128
    for t in (widest, 128):
        if C > t and C % t == 0:
            return t
    return C


def _vmem_limit_bytes(C, N, n_pad, c_tile, vmem_cap):
    bf16, f32 = 2, 4
    weights = 3 * n_pad * n_pad * bf16 + 3 * n_pad * f32        # single-buffered
    xf = C * n_pad * bf16                                       # single-buffered
    kv_cache = 2 * C * n_pad * bf16                             # persistent scratch
    streams = 2 * 2 * N * c_tile * f32                          # residual + out, 2-deep
    temps = (2 * C * n_pad * f32                                # k/v f32 before cast (j==0)
             + c_tile * n_pad * (f32 + bf16)                    # q
             + c_tile * C * (2 * f32 + bf16)                    # scores / p / attn
             + n_pad * c_tile * f32)                            # y^T
    est = weights + xf + kv_cache + streams + temps
    # TODO(synk): if dim grows past ~1.5k, K-tile the linears (accumulate into
    # VMEM scratch) instead of holding full (n_pad, n_pad) weights resident.
    # ~1.5x headroom, floor at the 32 MiB default scoped limit, stay well
    # under the physical capacity so the compiler keeps internal-scratch room.
    return int(min(max(int(1.5 * est), 32 << 20), (vmem_cap * 3) // 4))


def prepare_params(params, dim, lane_multiple=128, mxu_dtype=jnp.bfloat16):
    """One-time prep: transpose weights to (in, out), fold norm_fact into
    wq/bq, zero-pad N to a lane-dense multiple of 128, and cast weights to
    bf16.  Padding MUST stay exactly zero (see correctness invariants)."""
    wq, bq, wk, bk, wv, bv = params
    n = dim
    n_pad = _round_up(n, lane_multiple)
    norm = float(n) ** (-0.5)

    def prep_w(w, scale=1.0):
        wt = w.T.astype(jnp.float32) * scale
        return jnp.pad(wt, ((0, n_pad - n), (0, n_pad - n))).astype(mxu_dtype)

    def prep_b(b, scale=1.0):
        return jnp.pad(b.astype(jnp.float32) * scale,
                       (0, n_pad - n)).reshape(1, n_pad)

    return (prep_w(wq, norm), prep_b(bq, norm),
            prep_w(wk), prep_b(bk),
            prep_w(wv), prep_b(bv))


def tablock_forward(x, kernel_params, c_tile=None):
    """x: (B, C, N); kernel_params: output of prepare_params (pre-transposed,
    norm_fact-folded, lane-padded, bf16 weights / f32 biases)."""
    B, C, N = x.shape
    wq_s, bq_s, wk_s, bk_s, wv_s, bv_s = kernel_params
    n_pad = wq_s.shape[0]
    vmem_cap = _tpu_vmem_capacity_bytes()
    if c_tile is None:
        c_tile = _pick_c_tile(C, vmem_cap)
    assert C % c_tile == 0
    n_ct = C // c_tile

    # bf16, lane-padded x for the MXU operands (halves the x DMA traffic).
    x_mxu = jnp.pad(x, ((0, 0), (0, 0), (0, n_pad - N))).astype(jnp.bfloat16)
    # Residual in the output's (B, N, C) layout.  NOTE: pure row-major
    # reinterpretation of x (no transpose / pad / cast) -- correct only
    # because the kernel output and PyTorch's transpose(1,2).reshape are both
    # reinterpretations of the same buffer.
    x_res = x.reshape(B, N, C)

    # Weights / biases are identical for every grid step -> single-buffer;
    # xf's block index only changes on the (slow) batch axis -> single-buffer.
    w_spec = pl.BlockSpec((n_pad, n_pad), lambda b, j: (0, 0),
                          pipeline_mode=pl.Buffered(1))
    b_spec = pl.BlockSpec((1, n_pad), lambda b, j: (0, 0),
                          pipeline_mode=pl.Buffered(1))
    xf_spec = pl.BlockSpec((None, C, n_pad), lambda b, j: (b, 0, 0),
                           pipeline_mode=pl.Buffered(1))

    # TODO(synk): on v7x with B < 2 per chip, add a leading parallel axis of
    # size 2 that splits C-tiles across the two TensorCores (each with its own
    # k/v scratch) so the "arbitrary" j axis does not serialize onto one core.
    out = pl.pallas_call(
        functools.partial(tablock_kernel, N, c_tile),
        out_shape=jax.ShapeDtypeStruct((B, N, C), x.dtype),
        grid=(B, n_ct),
        in_specs=[
            xf_spec,                                                   # x (q rows + k/v)
            w_spec, b_spec,                                            # q
            w_spec, b_spec,                                            # k
            w_spec, b_spec,                                            # v
            pl.BlockSpec((None, N, c_tile), lambda b, j: (b, 0, j)),   # residual
        ],
        out_specs=pl.BlockSpec((None, N, c_tile), lambda b, j: (b, 0, j)),
        scratch_shapes=[pltpu.VMEM((C, n_pad), jnp.bfloat16),          # k cache
                        pltpu.VMEM((C, n_pad), jnp.bfloat16)],         # v cache
        compiler_params=pltpu.CompilerParams(
            # Batch axis splits across v7x's two TensorCores; the C-tile axis
            # must be "arbitrary" so the k/v scratch persists across j.
            dimension_semantics=("parallel", "arbitrary"),
            vmem_limit_bytes=_vmem_limit_bytes(C, N, n_pad, c_tile, vmem_cap)),
    )(x_mxu, wq_s, bq_s, wk_s, bk_s, wv_s, bv_s, x_res)

    # PyTorch's transpose(1,2).reshape(B, C, N) is a free row-major
    # reinterpretation of the (B, N, C) kernel output; no padded tail to drop.
    return out.reshape(B, C, N)


def tablock_ref(x, params):
    """Pure-JAX f32 reference mirroring the PyTorch forward exactly."""
    wq, bq, wk, bk, wv, bv = params
    B, C, N = x.shape
    q = x @ wq.T + bq
    k = x @ wk.T + bk
    v = x @ wv.T + bv
    attn = jax.nn.softmax((q @ jnp.swapaxes(k, -2, -1)) * (N ** (-0.5)), axis=-1)
    y = (attn @ v).transpose(0, 2, 1).reshape(B, C, N)
    return y + x  # dropout is identity in eval


def init_params(key, dim):
    # Deterministic init mimicking nn.Linear default: U(-1/sqrt(dim), 1/sqrt(dim)).
    bound = dim ** (-0.5)
    ks = jax.random.split(key, 6)
    wq = jax.random.uniform(ks[0], (dim, dim), jnp.float32, -bound, bound)
    bq = jax.random.uniform(ks[1], (dim,), jnp.float32, -bound, bound)
    wk = jax.random.uniform(ks[2], (dim, dim), jnp.float32, -bound, bound)
    bk = jax.random.uniform(ks[3], (dim,), jnp.float32, -bound, bound)
    wv = jax.random.uniform(ks[4], (dim, dim), jnp.float32, -bound, bound)
    bv = jax.random.uniform(ks[5], (dim,), jnp.float32, -bound, bound)
    return (wq, bq, wk, bk, wv, bv)


if __name__ == "__main__":
    B, C, N = 2, 8, 32   # N == dim of the TABlock; tiny deterministic shapes
    key = jax.random.PRNGKey(0)
    k_x, k_p = jax.random.split(key)
    x = jax.random.normal(k_x, (B, C, N), jnp.float32)
    params = init_params(k_p, N)

    kparams = prepare_params(params, N)   # one-time transpose/scale/pad/bf16
    out = jax.block_until_ready(tablock_forward(x, kparams))

    ref = tablock_ref(x, params)
    assert out.shape == (B, C, N)
    err = float(jnp.max(jnp.abs(out - ref)))
    # bf16 MXU operands -> allow ~1e-2-level deviation vs. the pure-f32 reference.
    assert jnp.allclose(out, ref, atol=3e-2, rtol=3e-2), f"max abs err {err}"
    print("KERNEL_OK")
</pallas_src>

<mosaic_0001>
module attributes {stable_mosaic.version = 11 : i64} {
  func.func @tablock_kernel(%arg0: i32, %arg1: i32, %arg2: memref<1x8x128xbf16, #tpu.memory_space<vmem>>, %arg3: memref<128x128xbf16, #tpu.memory_space<vmem>>, %arg4: memref<1x128xf32, #tpu.memory_space<vmem>>, %arg5: memref<128x128xbf16, #tpu.memory_space<vmem>>, %arg6: memref<1x128xf32, #tpu.memory_space<vmem>>, %arg7: memref<128x128xbf16, #tpu.memory_space<vmem>>, %arg8: memref<1x128xf32, #tpu.memory_space<vmem>>, %arg9: memref<1x32x8xf32, #tpu.memory_space<vmem>>, %arg10: memref<1x32x8xf32, #tpu.memory_space<vmem>>, %arg11: memref<8x128xbf16, #tpu.memory_space<vmem>>, %arg12: memref<8x128xbf16, #tpu.memory_space<vmem>>) attributes {dimension_semantics = [#tpu.dimension_semantics<parallel>, #tpu.dimension_semantics<arbitrary>], iteration_bounds = array<i64: 2, 1>, scalar_prefetch = 0 : i64, scratch_operands = 2 : i64, tpu.core_type = #tpu.core_type<tc>, window_params = [{pipeline_mode = #tpu.pipeline_mode<synchronous>, transform_indices = @transform_0, window_bounds = array<i64: 1, 8, 128>}, {pipeline_mode = #tpu.pipeline_mode<synchronous>, transform_indices = @transform_1, window_bounds = array<i64: 128, 128>}, {pipeline_mode = #tpu.pipeline_mode<synchronous>, transform_indices = @transform_2, window_bounds = array<i64: 1, 128>}, {pipeline_mode = #tpu.pipeline_mode<synchronous>, transform_indices = @transform_3, window_bounds = array<i64: 128, 128>}, {pipeline_mode = #tpu.pipeline_mode<synchronous>, transform_indices = @transform_4, window_bounds = array<i64: 1, 128>}, {pipeline_mode = #tpu.pipeline_mode<synchronous>, transform_indices = @transform_5, window_bounds = array<i64: 128, 128>}, {pipeline_mode = #tpu.pipeline_mode<synchronous>, transform_indices = @transform_6, window_bounds = array<i64: 1, 128>}, {transform_indices = @transform_7, window_bounds = array<i64: 1, 32, 8>}, {transform_indices = @transform_8, window_bounds = array<i64: 1, 32, 8>}]} {
    %c0_i32 = arith.constant 0 : i32
    %0 = arith.cmpi eq, %arg1, %c0_i32 : i32
    %1 = arith.extui %0 : i1 to i32
    %c0_i32_0 = arith.constant 0 : i32
    %2 = arith.cmpi ne, %1, %c0_i32_0 : i32
    scf.if %2 {
      %c0_20 = arith.constant 0 : index
      %c0_21 = arith.constant 0 : index
      %c0_22 = arith.constant 0 : index
      %36 = vector.load %arg2[%c0_20, %c0_21, %c0_22] : memref<1x8x128xbf16, #tpu.memory_space<vmem>>, vector<1x8x128xbf16>
      %37 = vector.shape_cast %36 : vector<1x8x128xbf16> to vector<8x128xbf16>
      %c0_23 = arith.constant 0 : index
      %c0_24 = arith.constant 0 : index
      %38 = vector.load %arg5[%c0_23, %c0_24] : memref<128x128xbf16, #tpu.memory_space<vmem>>, vector<128x128xbf16>
      %cst_25 = arith.constant dense<0.000000e+00> : vector<8x128xf32>
      %39 = tpu.matmul %37, %38, %cst_25 {dimension_numbers = #tpu.dot_dimension_numbers<[1], [0], [0], [1], [0, 0, 1, 1], [], []>} : vector<8x128xbf16>, vector<128x128xbf16>, vector<8x128xf32> -> vector<8x128xf32>
      %c0_26 = arith.constant 0 : index
      %c0_27 = arith.constant 0 : index
      %40 = vector.load %arg6[%c0_26, %c0_27] : memref<1x128xf32, #tpu.memory_space<vmem>>, vector<1x128xf32>
      %41 = vector.broadcast %40 : vector<1x128xf32> to vector<8x128xf32>
      %42 = arith.addf %39, %41 : vector<8x128xf32>
      %43 = arith.truncf %42 : vector<8x128xf32> to vector<8x128xbf16>
      %c0_28 = arith.constant 0 : index
      %c0_29 = arith.constant 0 : index
      %44 = vector.load %arg11[%c0_28, %c0_29] : memref<8x128xbf16, #tpu.memory_space<vmem>>, vector<8x128xbf16>
      tpu.vector_store %arg11[%c0_28, %c0_29], %43 {strides = array<i32>} : memref<8x128xbf16, #tpu.memory_space<vmem>>, vector<8x128xbf16>,
      %c0_30 = arith.constant 0 : index
      %c0_31 = arith.constant 0 : index
      %45 = vector.load %arg7[%c0_30, %c0_31] : memref<128x128xbf16, #tpu.memory_space<vmem>>, vector<128x128xbf16>
      %cst_32 = arith.constant dense<0.000000e+00> : vector<8x128xf32>
      %46 = tpu.matmul %37, %45, %cst_32 {dimension_numbers = #tpu.dot_dimension_numbers<[1], [0], [0], [1], [0, 0, 1, 1], [], []>} : vector<8x128xbf16>, vector<128x128xbf16>, vector<8x128xf32> -> vector<8x128xf32>
      %c0_33 = arith.constant 0 : index
      %c0_34 = arith.constant 0 : index
      %47 = vector.load %arg8[%c0_33, %c0_34] : memref<1x128xf32, #tpu.memory_space<vmem>>, vector<1x128xf32>
      %48 = vector.broadcast %47 : vector<1x128xf32> to vector<8x128xf32>
      %49 = arith.addf %46, %48 : vector<8x128xf32>
      %50 = arith.truncf %49 : vector<8x128xf32> to vector<8x128xbf16>
      %c0_35 = arith.constant 0 : index
      %c0_36 = arith.constant 0 : index
      %51 = vector.load %arg12[%c0_35, %c0_36] : memref<8x128xbf16, #tpu.memory_space<vmem>>, vector<8x128xbf16>
      tpu.vector_store %arg12[%c0_35, %c0_36], %50 {strides = array<i32>} : memref<8x128xbf16, #tpu.memory_space<vmem>>, vector<8x128xbf16>,
    } else {
    }
    %c8_i32 = arith.constant 8 : i32
    %3 = arith.muli %arg1, %c8_i32 : i32
    %4 = tpu.assume_multiple %3, 8 : i32
    %c0 = arith.constant 0 : index
    %5 = arith.index_cast %4 : i32 to index
    %c0_1 = arith.constant 0 : index
    %6 = vector.load %arg2[%c0, %5, %c0_1] : memref<1x8x128xbf16, #tpu.memory_space<vmem>>, vector<1x8x128xbf16>
    %7 = vector.shape_cast %6 : vector<1x8x128xbf16> to vector<8x128xbf16>
    %c0_2 = arith.constant 0 : index
    %c0_3 = arith.constant 0 : index
    %8 = vector.load %arg3[%c0_2, %c0_3] : memref<128x128xbf16, #tpu.memory_space<vmem>>, vector<128x128xbf16>
    %cst = arith.constant dense<0.000000e+00> : vector<8x128xf32>
    %9 = tpu.matmul %7, %8, %cst {dimension_numbers = #tpu.dot_dimension_numbers<[1], [0], [0], [1], [0, 0, 1, 1], [], []>} : vector<8x128xbf16>, vector<128x128xbf16>, vector<8x128xf32> -> vector<8x128xf32>
    %c0_4 = arith.constant 0 : index
    %c0_5 = arith.constant 0 : index
    %10 = vector.load %arg4[%c0_4, %c0_5] : memref<1x128xf32, #tpu.memory_space<vmem>>, vector<1x128xf32>
    %11 = vector.broadcast %10 : vector<1x128xf32> to vector<8x128xf32>
    %12 = arith.addf %9, %11 : vector<8x128xf32>
    %13 = arith.truncf %12 : vector<8x128xf32> to vector<8x128xbf16>
    %c0_6 = arith.constant 0 : index
    %c0_7 = arith.constant 0 : index
    %14 = vector.load %arg11[%c0_6, %c0_7] : memref<8x128xbf16, #tpu.memory_space<vmem>>, vector<8x128xbf16>
    %cst_8 = arith.constant dense<0.000000e+00> : vector<8x8xf32>
    %15 = tpu.matmul %13, %14, %cst_8 {dimension_numbers = #tpu.dot_dimension_numbers<[1], [1], [0], [0], [0, 0, 1, 0], [], []>} : vector<8x128xbf16>, vector<8x128xbf16>, vector<8x8xf32> -> vector<8x8xf32>
    %cst_9 = arith.constant dense<0xFF800000> : vector<8xf32>
    %16 = vector.multi_reduction <maximumf>, %15, %cst_9 [1] : vector<8x8xf32> to vector<8xf32>
    %17 = vector.shape_cast %16 : vector<8xf32> to vector<8x1xf32>
    %18 = vector.broadcast %17 : vector<8x1xf32> to vector<8x8xf32>
    %19 = arith.subf %15, %18 : vector<8x8xf32>
    %20 = math.exp %19 : vector<8x8xf32>
    %cst_10 = arith.constant dense<0.000000e+00> : vector<8xf32>
    %21 = vector.multi_reduction <add>, %20, %cst_10 [1] : vector<8x8xf32> to vector<8xf32>
    %22 = vector.shape_cast %21 : vector<8xf32> to vector<8x1xf32>
    %23 = tpu.reciprocal %22 {approx = true} : vector<8x1xf32> -> vector<8x1xf32>
    %24 = vector.broadcast %23 : vector<8x1xf32> to vector<8x8xf32>
    %25 = arith.mulf %20, %24 : vector<8x8xf32>
    %26 = arith.truncf %25 : vector<8x8xf32> to vector<8x8xbf16>
    %c0_11 = arith.constant 0 : index
    %c0_12 = arith.constant 0 : index
    %27 = vector.load %arg12[%c0_11, %c0_12] : memref<8x128xbf16, #tpu.memory_space<vmem>>, vector<8x128xbf16>
    %cst_13 = arith.constant dense<0.000000e+00> : vector<128x8xf32>
    %28 = tpu.matmul %27, %26, %cst_13 {dimension_numbers = #tpu.dot_dimension_numbers<[0], [1], [1], [0], [0, 1, 1, 0], [], []>} : vector<8x128xbf16>, vector<8x8xbf16>, vector<128x8xf32> -> vector<128x8xf32>
    %29 = vector.extract_strided_slice %28 {offsets = [0, 0], sizes = [32, 8], strides = [1, 1]} : vector<128x8xf32> to vector<32x8xf32>
    %c0_14 = arith.constant 0 : index
    %c0_15 = arith.constant 0 : index
    %c0_16 = arith.constant 0 : index
    %30 = vector.load %arg9[%c0_14, %c0_15, %c0_16] : memref<1x32x8xf32, #tpu.memory_space<vmem>>, vector<1x32x8xf32>
    %31 = vector.shape_cast %30 : vector<1x32x8xf32> to vector<32x8xf32>
    %32 = arith.addf %29, %31 : vector<32x8xf32>
    %c0_17 = arith.constant 0 : index
    %c0_18 = arith.constant 0 : index
    %c0_19 = arith.constant 0 : index
    %33 = vector.load %arg10[%c0_17, %c0_18, %c0_19] : memref<1x32x8xf32, #tpu.memory_space<vmem>>, vector<1x32x8xf32>
    %34 = vector.shape_cast %33 : vector<1x32x8xf32> to vector<32x8xf32>
    %35 = vector.shape_cast %32 : vector<32x8xf32> to vector<1x32x8xf32>
    tpu.vector_store %arg10[%c0_17, %c0_18, %c0_19], %35 {strides = array<i32>} : memref<1x32x8xf32, #tpu.memory_space<vmem>>, vector<1x32x8xf32>,
    return
  }
  func.func @transform_0(%arg0: i32, %arg1: i32) -> (i32, i32, i32) {
    %c0_i32 = arith.constant 0 : i32
    %c0_i32_0 = arith.constant 0 : i32
    %c0_i32_1 = arith.constant 0 : i32
    return %arg0, %c0_i32, %c0_i32_0 : i32, i32, i32
  }
  func.func @transform_1(%arg0: i32, %arg1: i32) -> (i32, i32) {
    %c0_i32 = arith.constant 0 : i32
    %c0_i32_0 = arith.constant 0 : i32
    %c0_i32_1 = arith.constant 0 : i32
    return %c0_i32, %c0_i32_0 : i32, i32
  }
  func.func @transform_2(%arg0: i32, %arg1: i32) -> (i32, i32) {
    %c0_i32 = arith.constant 0 : i32
    %c0_i32_0 = arith.constant 0 : i32
    %c0_i32_1 = arith.constant 0 : i32
    return %c0_i32, %c0_i32_0 : i32, i32
  }
  func.func @transform_3(%arg0: i32, %arg1: i32) -> (i32, i32) {
    %c0_i32 = arith.constant 0 : i32
    %c0_i32_0 = arith.constant 0 : i32
    %c0_i32_1 = arith.constant 0 : i32
    return %c0_i32, %c0_i32_0 : i32, i32
  }
  func.func @transform_4(%arg0: i32, %arg1: i32) -> (i32, i32) {
    %c0_i32 = arith.constant 0 : i32
    %c0_i32_0 = arith.constant 0 : i32
    %c0_i32_1 = arith.constant 0 : i32
    return %c0_i32, %c0_i32_0 : i32, i32
  }
  func.func @transform_5(%arg0: i32, %arg1: i32) -> (i32, i32) {
    %c0_i32 = arith.constant 0 : i32
    %c0_i32_0 = arith.constant 0 : i32
    %c0_i32_1 = arith.constant 0 : i32
    return %c0_i32, %c0_i32_0 : i32, i32
  }
  func.func @transform_6(%arg0: i32, %arg1: i32) -> (i32, i32) {
    %c0_i32 = arith.constant 0 : i32
    %c0_i32_0 = arith.constant 0 : i32
    %c0_i32_1 = arith.constant 0 : i32
    return %c0_i32, %c0_i32_0 : i32, i32
  }
  func.func @transform_7(%arg0: i32, %arg1: i32) -> (i32, i32, i32) {
    %c0_i32 = arith.constant 0 : i32
    %c0_i32_0 = arith.constant 0 : i32
    return %arg0, %c0_i32, %arg1 : i32, i32, i32
  }
  func.func @transform_8(%arg0: i32, %arg1: i32) -> (i32, i32, i32) {
    %c0_i32 = arith.constant 0 : i32
    %c0_i32_0 = arith.constant 0 : i32
    return %arg0, %c0_i32, %arg1 : i32, i32, i32
  }
}

</mosaic_0001>

<llo_original>
// kernel: tpu_custom_call.1
$region0: #{tpu_custom_call.1}
  #allocation0 [shape = 'u32[]', space=smem, size = 0x4, offset = 0x4, fixed_abs, tag = 'smem constant byte address 0x4 - core index']
  #allocation1 [shape = 'u32[144,128]{1,0:T(1,128)}', space=vmem, size = 0x12000, scoped, tag = 'internal scratch']
  #allocation2 [shape = 'bf16[8,128]{1,0:T(8,128)(2,1)}', space=vmem, size = 0x800, scoped, tag = 'scratch operand']
  #allocation3 [shape = 'bf16[8,128]{1,0:T(8,128)(2,1)}', space=vmem, size = 0x800, scoped, tag = 'scratch operand']
  %s0 = inlined_call_operand.vmem [shape: bf16[2,8,128], index: 0, kind: input, shape index: {}]
  %s1 = inlined_call_operand.vmem [shape: bf16[128,128], index: 1, kind: input, shape index: {}]
  %s2 = inlined_call_operand.vmem [shape: f32[1,128], index: 2, kind: input, shape index: {}]
  %s3 = inlined_call_operand.hbm [shape: bf16[128,128], index: 3, kind: input, shape index: {}]
  %s4 = inlined_call_operand.vmem [shape: f32[1,128], index: 4, kind: input, shape index: {}]
  %s5 = inlined_call_operand.hbm [shape: bf16[128,128], index: 5, kind: input, shape index: {}]
  %s6 = inlined_call_operand.vmem [shape: f32[1,128], index: 6, kind: input, shape index: {}]
  %s7 = inlined_call_operand.vmem [shape: f32[2,32,8], index: 7, kind: input, shape index: {}]
  %s8 = inlined_call_operand.vmem [shape: f32[2,32,8], index: 8, kind: output, shape index: {}]
  %s9 = sld [smem:[#allocation0]]
  $region77: #{tpu_custom_call.1} parent=0
    _
  %s11 = ssub.s32 1, %s9
  %s12 = scalar_select 0, %s11, %s9
  $region1: #{tpu_custom_call.1} parent=0
    #allocation4 [shape = 'u8[32768]{0}', space=vmem, size = 0x8000, scoped, tag = 'input window, operand 3, single buffered']
    #allocation5 [shape = 's32[2]{0}', space=sflag, size = 0x8, scoped, tag = 'scoped memory for tpu_custom_call.1']
    #allocation6 [shape = 'u8[32768]{0}', space=vmem, size = 0x8000, scoped, tag = 'input window, operand 5, single buffered']
    #allocation7 [shape = 's32[1]{0}', space=sflag, size = 0x4, scoped, tag = 'scoped memory for tpu_custom_call.1']
    %13 = vsyncpa [#allocation5], 0
    %14 = vsyncpa [#allocation7], 0
    loop: start=0, step=1, limit=4
    $region2: #{tpu_custom_call.1} parent=1 // loop_pre_header
      _
    $region3: #{tpu_custom_call.1} parent=1 // loop_header
      %s16 = sphi 0, %s20
      %p17 = scmp.ge.s32.totalorder %s16, 4
      %s23 = sphi 0, %s35
      %s24 = sphi 0, %s31
      %s25 = sphi 0, %s23
      %s26 = sphi 0, %s24
      %s27 = sphi 0, %s25
      %s28 = sphi 0, %s26
      %s38 = sphi 0, %s40
      %s41 = sphi 0, %s38
      %s42 = sphi 0, %s41
      %s58 = sphi 0, %s42
      %s62 = sphi 0, %s62
      %s64 = sphi 0, %s62
      %s65 = sphi 0, %s64
      %s79 = sphi 0, %s65
      %s83 = sphi 0, %s83
      %s85 = sphi 0, %s83
      %s86 = sphi 0, %s85
      %s100 = sphi 0, %s86
      %s104 = sphi 0, %s104
      %s106 = sphi 0, %s104
      %s107 = sphi 0, %s106
      %s121 = sphi 0, %s107
      %s125 = sphi 0, %s125
      %s127 = sphi 0, %s125
      %s128 = sphi 0, %s127
      %s142 = sphi 0, %s128
      %s146 = sphi 0, %s146
      %s148 = sphi 0, %s146
      %s149 = sphi 0, %s148
      %s163 = sphi 0, %s149
      %s167 = sphi 0, %s167
      %s169 = sphi 0, %s167
      %s170 = sphi 0, %s169
      %s184 = sphi 0, %s170
      %s192 = sphi 0, %s194
      %s195 = sphi 0, %s192
      %s196 = sphi 0, %s195
      %s212 = sphi 0, %s196
      %s220 = sphi 0, %s222
      %s223 = sphi 0, %s220
      %s224 = sphi 0, %s223
      %s240 = sphi 0, %s224
    $region4: #{tpu_custom_call.1} parent=1 // loop_header_branch
      %19 = sbr.rel (%p17) target = $region8
    $region5: #{tpu_custom_call.1} parent=1 // loop_body
      %s21 = ssub.s32 %s16, 1
      %s22 = ssub.s32 %s16, 2
      %s29 = sadd.s32 1, %s24
      %p30 = scmp.ge.s32.totalorder %s29, 1
      %s31 = scalar_select %p30, 0, %s29
      %s32 = sadd.s32 1, %s23
      %s33 = scalar_select %p30, %s32, %s23
      %p34 = scmp.ge.s32.totalorder %s33, 2
      %s35 = scalar_select %p34, 0, %s33
      %s36 = ssub.s32 %s23, %s35
      %p37 = scmp.eq.s32.totalorder %s36, 0
      %s39 = sadd.s32 %s38, 1
      %s40 = scalar_select %p37, %s38, %s39
      %p43 = pneg %p37
      %p44 = scmp.eq.s32.totalorder %s16, 1
      %p45 = por %p43, %p44
      %p46 = scmp.ne.s32.totalorder %s38, %s41
      %p47 = scmp.eq.s32.totalorder %s16, 0
      %p48 = por %p46, %p47
      %p49 = scmp.ne.s32.totalorder %s38, %s41
      %p50 = scmp.eq.s32.totalorder %s21, 1
      %p51 = por %p49, %p50
      %p52 = scmp.ne.s32.totalorder %s41, %s42
      %p53 = scmp.eq.s32.totalorder %s21, 0
      %p54 = por %p52, %p53
      %p55 = scmp.ne.s32.totalorder %s41, %s42
      %p56 = scmp.eq.s32.totalorder %s22, 1
      %p57 = por %p55, %p56
      %p59 = scmp.ne.s32.totalorder %s42, %s58
      %p60 = scmp.eq.s32.totalorder %s22, 0
      %p61 = por %p59, %p60
      %s63 = sadd.s32 %s62, 1
      %p66 = scmp.eq.s32.totalorder %s16, 1
      %p67 = scmp.ne.s32.totalorder %s62, %s64
      %p68 = scmp.eq.s32.totalorder %s16, 0
      %p69 = por %p67, %p68
      %p70 = scmp.ne.s32.totalorder %s62, %s64
      %p71 = scmp.eq.s32.totalorder %s21, 1
      %p72 = por %p70, %p71
      %p73 = scmp.ne.s32.totalorder %s64, %s65
      %p74 = scmp.eq.s32.totalorder %s21, 0
      %p75 = por %p73, %p74
      %p76 = scmp.ne.s32.totalorder %s64, %s65
      %p77 = scmp.eq.s32.totalorder %s22, 1
      %p78 = por %p76, %p77
      %p80 = scmp.ne.s32.totalorder %s65, %s79
      %p81 = scmp.eq.s32.totalorder %s22, 0
      %p82 = por %p80, %p81
      %s84 = sadd.s32 %s83, 1
      %p87 = scmp.eq.s32.totalorder %s16, 1
      %p88 = scmp.ne.s32.totalorder %s83, %s85
      %p89 = scmp.eq.s32.totalorder %s16, 0
      %p90 = por %p88, %p89
      %p91 = scmp.ne.s32.totalorder %s83, %s85
      %p92 = scmp.eq.s32.totalorder %s21, 1
      %p93 = por %p91, %p92
      %p94 = scmp.ne.s32.totalorder %s85, %s86
      %p95 = scmp.eq.s32.totalorder %s21, 0
      %p96 = por %p94, %p95
      %p97 = scmp.ne.s32.totalorder %s85, %s86
      %p98 = scmp.eq.s32.totalorder %s22, 1
      %p99 = por %p97, %p98
      %p101 = scmp.ne.s32.totalorder %s86, %s100
      %p102 = scmp.eq.s32.totalorder %s22, 0
      %p103 = por %p101, %p102
      %s105 = sadd.s32 %s104, 1
      %p108 = scmp.eq.s32.totalorder %s16, 1
      %p109 = scmp.ne.s32.totalorder %s104, %s106
      %p110 = scmp.eq.s32.totalorder %s16, 0
      %p111 = por %p109, %p110
      %p112 = scmp.ne.s32.totalorder %s104, %s106
      %p113 = scmp.eq.s32.totalorder %s21, 1
      %p114 = por %p112, %p113
      %p115 = scmp.ne.s32.totalorder %s106, %s107
      %p116 = scmp.eq.s32.totalorder %s21, 0
      %p117 = por %p115, %p116
      %p118 = scmp.ne.s32.totalorder %s106, %s107
      %p119 = scmp.eq.s32.totalorder %s22, 1
      %p120 = por %p118, %p119
      %p122 = scmp.ne.s32.totalorder %s107, %s121
      %p123 = scmp.eq.s32.totalorder %s22, 0
      %p124 = por %p122, %p123
      %s126 = sadd.s32 %s125, 1
      %p129 = scmp.eq.s32.totalorder %s16, 1
      %p130 = scmp.ne.s32.totalorder %s125, %s127
      %p131 = scmp.eq.s32.totalorder %s16, 0
      %p132 = por %p130, %p131
      %p133 = scmp.ne.s32.totalorder %s125, %s127
      %p134 = scmp.eq.s32.totalorder %s21, 1
      %p135 = por %p133, %p134
      %p136 = scmp.ne.s32.totalorder %s127, %s128
      %p137 = scmp.eq.s32.totalorder %s21, 0
      %p138 = por %p136, %p137
      %p139 = scmp.ne.s32.totalorder %s127, %s128
      %p140 = scmp.eq.s32.totalorder %s22, 1
      %p141 = por %p139, %p140
      %p143 = scmp.ne.s32.totalorder %s128, %s142
      %p144 = scmp.eq.s32.totalorder %s22, 0
      %p145 = por %p143, %p144
      %s147 = sadd.s32 %s146, 1
      %p150 = scmp.eq.s32.totalorder %s16, 1
      %p151 = scmp.ne.s32.totalorder %s146, %s148
      %p152 = scmp.eq.s32.totalorder %s16, 0
      %p153 = por %p151, %p152
      %p154 = scmp.ne.s32.totalorder %s146, %s148
      %p155 = scmp.eq.s32.totalorder %s21, 1
      %p156 = por %p154, %p155
      %p157 = scmp.ne.s32.totalorder %s148, %s149
      %p158 = scmp.eq.s32.totalorder %s21, 0
      %p159 = por %p157, %p158
      %p160 = scmp.ne.s32.totalorder %s148, %s149
      %p161 = scmp.eq.s32.totalorder %s22, 1
      %p162 = por %p160, %p161
      %p164 = scmp.ne.s32.totalorder %s149, %s163
      %p165 = scmp.eq.s32.totalorder %s22, 0
      %p166 = por %p164, %p165
      %s168 = sadd.s32 %s167, 1
      %p171 = scmp.eq.s32.totalorder %s16, 1
      %p172 = scmp.ne.s32.totalorder %s167, %s169
      %p173 = scmp.eq.s32.totalorder %s16, 0
      %p174 = por %p172, %p173
      %p175 = scmp.ne.s32.totalorder %s167, %s169
      %p176 = scmp.eq.s32.totalorder %s21, 1
      %p177 = por %p175, %p176
      %p178 = scmp.ne.s32.totalorder %s169, %s170
      %p179 = scmp.eq.s32.totalorder %s21, 0
      %p180 = por %p178, %p179
      %p181 = scmp.ne.s32.totalorder %s169, %s170
      %p182 = scmp.eq.s32.totalorder %s22, 1
      %p183 = por %p181, %p182
      %p185 = scmp.ne.s32.totalorder %s170, %s184
      %p186 = scmp.eq.s32.totalorder %s22, 0
      %p187 = por %p185, %p186
      %s188 = ssub.s32 %s23, %s35
      %s189 = ssub.s32 %s24, %s31
      %s190 = sor.u32 %s188, %s189
      %p191 = scmp.eq.s32.totalorder %s190, 0
      %s193 = sadd.s32 %s192, 1
      %s194 = scalar_select %p191, %s192, %s193
      %p197 = pneg %p191
      %p198 = scmp.eq.s32.totalorder %s16, 1
      %p199 = por %p197, %p198
      %p200 = scmp.ne.s32.totalorder %s192, %s195
      %p201 = scmp.eq.s32.totalorder %s16, 0
      %p202 = por %p200, %p201
      %p203 = scmp.ne.s32.totalorder %s192, %s195
      %p204 = scmp.eq.s32.totalorder %s21, 1
      %p205 = por %p203, %p204
      %p206 = scmp.ne.s32.totalorder %s195, %s196
      %p207 = scmp.eq.s32.totalorder %s21, 0
      %p208 = por %p206, %p207
      %p209 = scmp.ne.s32.totalorder %s195, %s196
      %p210 = scmp.eq.s32.totalorder %s22, 1
      %p211 = por %p209, %p210
      %p213 = scmp.ne.s32.totalorder %s196, %s212
      %p214 = scmp.eq.s32.totalorder %s22, 0
      %p215 = por %p213, %p214
      %s216 = ssub.s32 %s23, %s35
      %s217 = ssub.s32 %s24, %s31
      %s218 = sor.u32 %s216, %s217
      %p219 = scmp.eq.s32.totalorder %s218, 0
      %s221 = sadd.s32 %s220, 1
      %s222 = scalar_select %p219, %s220, %s221
      %p225 = pneg %p219
      %p226 = scmp.eq.s32.totalorder %s16, 1
      %p227 = por %p225, %p226
      %p228 = scmp.ne.s32.totalorder %s220, %s223
      %p229 = scmp.eq.s32.totalorder %s16, 0
      %p230 = por %p228, %p229
      %p231 = scmp.ne.s32.totalorder %s220, %s223
      %p232 = scmp.eq.s32.totalorder %s21, 1
      %p233 = por %p231, %p232
      %p234 = scmp.ne.s32.totalorder %s223, %s224
      %p235 = scmp.eq.s32.totalorder %s21, 0
      %p236 = por %p234, %p235
      %p237 = scmp.ne.s32.totalorder %s223, %s224
      %p238 = scmp.eq.s32.totalorder %s22, 1
      %p239 = por %p237, %p238
      %p241 = scmp.ne.s32.totalorder %s224, %s240
      %p242 = scmp.eq.s32.totalorder %s22, 0
      %p243 = por %p241, %p242
      %p244 = scmp.le.s32.totalorder 1, %s16
      %p245 = scmp.lt.s32.totalorder %s16, 3
      %p246 = pnand %p244, %p245
      %p247 = pneg %p246
      // Predicated region
      $region9: #{tpu_custom_call.1} parent=5 // pred_check
        _
      $region10: #{tpu_custom_call.1} parent=5 // pred_check_branch
        %249 = sbr.rel (%p246) target = $region12
      $region11: #{tpu_custom_call.1} parent=5 // pred_region
        %s250 = ssub.s32 %s16, 1
        // Predicated region
        $region13: #{tpu_custom_call.1} parent=11 // pred_check
          %p251 = pneg %p54
        $region14: #{tpu_custom_call.1} parent=11 // pred_check_branch
          %253 = sbr.rel (%p251) target = $region16
        $region15: #{tpu_custom_call.1} parent=11 // pred_region
          %p254 = scmp.lt.s32.totalorder %s25, 1
          %s255 = scalar_select %p254, %s25, 1
          %s256 = smul.addr %s255, 4
          %s257 = scalar_lea.vmem %s0, %s256
        $region16: #{tpu_custom_call.1} parent=11 // pred_fallthru
          _
        // Predicated region
        $region17: #{tpu_custom_call.1} parent=11 // pred_check
          %p258 = pneg %p75
        $region18: #{tpu_custom_call.1} parent=11 // pred_check_branch
          %260 = sbr.rel (%p258) target = $region20
        $region19: #{tpu_custom_call.1} parent=11 // pred_region
          _
        $region20: #{tpu_custom_call.1} parent=11 // pred_fallthru
          _
        // Predicated region
        $region21: #{tpu_custom_call.1} parent=11 // pred_check
          %p261 = pneg %p96
        $region22: #{tpu_custom_call.1} parent=11 // pred_check_branch
          %263 = sbr.rel (%p261) target = $region24
        $region23: #{tpu_custom_call.1} parent=11 // pred_region
          _
        $region24: #{tpu_custom_call.1} parent=11 // pred_fallthru
          _
        // Predicated region
        $region25: #{tpu_custom_call.1} parent=11 // pred_check
          %p264 = pneg %p117
        $region26: #{tpu_custom_call.1} parent=11 // pred_check_branch
          %266 = sbr.rel (%p264) target = $region28
        $region27: #{tpu_custom_call.1} parent=11 // pred_region
          %s268 = ssub.s32 1024, 1024
          %269 = vsyncadd [#allocation5], %s268
          %s270 = sshll.u32 [#allocation4], 4
          %s271 = int_to_ptr.vmem [resolvable:$true] %s270
          %276 = dma.hbm_to_vmem [thread:$0]  %s3, 1024, %s271, [#allocation5], 64, 64, 4
        $region28: #{tpu_custom_call.1} parent=11 // pred_fallthru
          _
        // Predicated region
        $region29: #{tpu_custom_call.1} parent=11 // pred_check
          %p277 = pneg %p138
        $region30: #{tpu_custom_call.1} parent=11 // pred_check_branch
          %279 = sbr.rel (%p277) target = $region32
        $region31: #{tpu_custom_call.1} parent=11 // pred_region
          _
        $region32: #{tpu_custom_call.1} parent=11 // pred_fallthru
          _
        // Predicated region
        $region33: #{tpu_custom_call.1} parent=11 // pred_check
          %p280 = pneg %p159
        $region34: #{tpu_custom_call.1} parent=11 // pred_check_branch
          %282 = sbr.rel (%p280) target = $region36
        $region35: #{tpu_custom_call.1} parent=11 // pred_region
          %s284 = ssub.s32 1024, 1024
          %285 = vsyncadd [#allocation7], %s284
          %s286 = sshll.u32 [#allocation6], 4
          %s287 = int_to_ptr.vmem [resolvable:$true] %s286
          %292 = dma.hbm_to_vmem [thread:$0]  %s5, 1024, %s287, [#allocation7], 64, 64, 4
        $region36: #{tpu_custom_call.1} parent=11 // pred_fallthru
          _
        // Predicated region
        $region37: #{tpu_custom_call.1} parent=11 // pred_check
          %p293 = pneg %p180
        $region38: #{tpu_custom_call.1} parent=11 // pred_check_branch
          %295 = sbr.rel (%p293) target = $region40
        $region39: #{tpu_custom_call.1} parent=11 // pred_region
          _
        $region40: #{tpu_custom_call.1} parent=11 // pred_fallthru
          _
      $region12: #{tpu_custom_call.1} parent=5 // pred_fallthru
        _
      %p296 = scmp.lt.s32.totalorder %s16, 2
      // Predicated region
      $region41: #{tpu_custom_call.1} parent=5 // pred_check
        %p297 = pneg %p296
      $region42: #{tpu_custom_call.1} parent=5 // pred_check_branch
        %299 = sbr.rel (%p297) target = $region44
      $region43: #{tpu_custom_call.1} parent=5 // pred_region
        // Predicated region
        $region45: #{tpu_custom_call.1} parent=43 // pred_check
          %p300 = pneg %p202
        $region46: #{tpu_custom_call.1} parent=43 // pred_check_branch
          %302 = sbr.rel (%p300) target = $region48
        $region47: #{tpu_custom_call.1} parent=43 // pred_region
          %p303 = scmp.lt.s32.totalorder %s23, 1
          %s304 = scalar_select %p303, %s23, 1
          %p305 = scmp.lt.s32.totalorder %s24, 0
          %s306 = scalar_select %p305, %s24, 0
          %s307 = smul.addr %s304, 4
          %s308 = sadd.s32 %s306, %s307
          %s309 = smul.addr %s308, 8
          %s310 = scalar_lea.vmem %s7, %s309
        $region48: #{tpu_custom_call.1} parent=43 // pred_fallthru
          _
      $region44: #{tpu_custom_call.1} parent=5 // pred_fallthru
        _
      %p311 = scmp.le.s32.totalorder 1, %s16
      %p312 = scmp.lt.s32.totalorder %s16, 3
      %p313 = pnand %p311, %p312
      %p314 = pneg %p313
      // Predicated region
      $region49: #{tpu_custom_call.1} parent=5 // pred_check
        _
      $region50: #{tpu_custom_call.1} parent=5 // pred_check_branch
        %316 = sbr.rel (%p313) target = $region52
      $region51: #{tpu_custom_call.1} parent=5 // pred_region
        %s317 = ssub.s32 %s16, 1
        // Predicated region
        $region53: #{tpu_custom_call.1} parent=51 // pred_check
          %p318 = pneg %p117
        $region54: #{tpu_custom_call.1} parent=51 // pred_check_branch
          %320 = sbr.rel (%p318) target = $region56
        $region55: #{tpu_custom_call.1} parent=51 // pred_region
          %321 = dma.done [#allocation5], 1024
        $region56: #{tpu_custom_call.1} parent=51 // pred_fallthru
          _
        // Predicated region
        $region57: #{tpu_custom_call.1} parent=51 // pred_check
          %p322 = pneg %p159
        $region58: #{tpu_custom_call.1} parent=51 // pred_check_branch
          %324 = sbr.rel (%p322) target = $region60
        $region59: #{tpu_custom_call.1} parent=51 // pred_region
          %325 = dma.done [#allocation7], 1024
        $region60: #{tpu_custom_call.1} parent=51 // pred_fallthru
          _
        %p326 = scmp.lt.s32.totalorder %s25, 1
        %s327 = scalar_select %p326, %s25, 1
        %s328 = smul.addr %s327, 4
        %s329 = scalar_lea.vmem %s0, %s328
        %p330 = pneg %p54
        %p331 = pneg %p51
        %p332 = pneg %p75
        %p333 = pneg %p72
        %p334 = pneg %p96
        %p335 = pneg %p93
        %p336 = pneg %p117
        %p337 = pneg %p114
        %p338 = pneg %p138
        %p339 = pneg %p135
        %p340 = pneg %p159
        %p341 = pneg %p156
        %p342 = pneg %p180
        %p343 = pneg %p177
        %p344 = scmp.lt.s32.totalorder %s25, 1
        %s345 = scalar_select %p344, %s25, 1
        %p346 = scmp.lt.s32.totalorder %s26, 0
        %s347 = scalar_select %p346, %s26, 0
        %s348 = smul.addr %s345, 4
        %s349 = sadd.s32 %s347, %s348
        %s350 = smul.addr %s349, 8
        %s351 = scalar_lea.vmem %s7, %s350
        %p352 = pneg %p208
        %p353 = pneg %p205
        %p354 = pneg %p236
        %p355 = pneg %p233
        %p356 = scmp.lt.s32.totalorder %s25, 1
        %s357 = scalar_select %p356, %s25, 1
        %p358 = scmp.lt.s32.totalorder %s26, 0
        %s359 = scalar_select %p358, %s26, 0
        %s360 = smul.addr %s357, 4
        %s361 = sadd.s32 %s359, %s360
        %s362 = smul.addr %s361, 8
        %s363 = scalar_lea.vmem %s8, %s362
        %p364 = scmp.lt.s32.totalorder %s25, 1
        %s365 = scalar_select %p364, %s25, 1
        %s366 = smul.addr %s365, 4
        %s367 = scalar_lea.vmem %s0, %s366
        %p368 = scmp.lt.s32.totalorder %s25, 1
        %s369 = scalar_select %p368, %s25, 1
        %p370 = scmp.lt.s32.totalorder %s26, 0
        %s371 = scalar_select %p370, %s26, 0
        %s372 = smul.addr %s369, 4
        %s373 = sadd.s32 %s371, %s372
        %s374 = smul.addr %s373, 8
        %s375 = scalar_lea.vmem %s7, %s374
        %p376 = scmp.lt.s32.totalorder %s25, 1
        %s377 = scalar_select %p376, %s25, 1
        %p378 = scmp.lt.s32.totalorder %s26, 0
        %s379 = scalar_select %p378, %s26, 0
        %s380 = smul.addr %s377, 4
        %s381 = sadd.s32 %s379, %s380
        %s382 = smul.addr %s381, 8
        %s383 = scalar_lea.vmem %s8, %s382
        %p385 = scmp.eq.s32.totalorder %s26, 0
        // Predicated region
        $region61: #{tpu_custom_call.1} parent=51 // pred_check
          %p386 = pneg %p385
        $region62: #{tpu_custom_call.1} parent=51 // pred_check_branch
          %388 = sbr.rel (%p386) target = $region64
        $region63: #{tpu_custom_call.1} parent=51 // pred_region
          %v389 = vld [vmem:[%s367] sm:$0xf]
          %v390 = vld [vmem:[#allocation4] sm:$0xf]
          %v391 = vld [vmem:[#allocation4 + $0x4] sm:$0xf]
          %v392 = vld [vmem:[#allocation4 + $0x8] sm:$0xf]
          %v393 = vld [vmem:[#allocation4 + $0xc] sm:$0xf]
          %v394 = vld [vmem:[#allocation4 + $0x10] sm:$0xf]
          %v395 = vld [vmem:[#allocation4 + $0x14] sm:$0xf]
          %v396 = vld [vmem:[#allocation4 + $0x18] sm:$0xf]
          %v397 = vld [vmem:[#allocation4 + $0x1c] sm:$0xf]
          %v398 = vld [vmem:[#allocation4 + $0x20] sm:$0xf]
          %v399 = vld [vmem:[#allocation4 + $0x24] sm:$0xf]
          %v400 = vld [vmem:[#allocation4 + $0x28] sm:$0xf]
          %v401 = vld [vmem:[#allocation4 + $0x2c] sm:$0xf]
          %v402 = vld [vmem:[#allocation4 + $0x30] sm:$0xf]
          %v403 = vld [vmem:[#allocation4 + $0x34] sm:$0xf]
          %v404 = vld [vmem:[#allocation4 + $0x38] sm:$0xf]
          %v405 = vld [vmem:[#allocation4 + $0x3c] sm:$0xf]
          %v406 = vld [vmem:[%s4] sm:$0x1]
          %v408 = vlaneseq
          %v409 = vshrl.u32 %v408, 7
          %v410 = vsub.s32 0, %v409
          %v411 = vrot.slane %v406, %v410
          %v429 = vunpack.c.l.b16 %v390
          %v430 = vunpack.c.l.b16 %v391
          %v431 = vunpack.c.l.b16 %v392
          %v432 = vunpack.c.l.b16 %v393
          %v433 = vunpack.c.l.b16 %v394
          %v434 = vunpack.c.l.b16 %v395
          %v435 = vunpack.c.l.b16 %v396
          %v436 = vunpack.c.l.b16 %v397
          %v437 = vunpack.c.l.b16 %v398
          %v438 = vunpack.c.l.b16 %v399
          %v439 = vunpack.c.l.b16 %v400
          %v440 = vunpack.c.l.b16 %v401
          %v441 = vunpack.c.l.b16 %v402
          %v442 = vunpack.c.l.b16 %v403
          %v443 = vunpack.c.l.b16 %v404
          %v444 = vunpack.c.l.b16 %v405
          %v445 = vpack.c.b16 %v430, %v429
          %v446 = vpack.c.b16 %v432, %v431
          %v447 = vpack.c.b16 %v434, %v433
          %v448 = vpack.c.b16 %v436, %v435
          %v449 = vpack.c.b16 %v438, %v437
          %v450 = vpack.c.b16 %v440, %v439
          %v451 = vpack.c.b16 %v442, %v441
          %v452 = vpack.c.b16 %v444, %v443
          %461 = vmatprep.subr.bf16.mxu0 0
          %462 = vmatpush1.bf16.msra.mxu0 %v452
          %463 = vmatprep.subr.bf16.mxu0 0
          %464 = vmatpush1.bf16.msra.mxu0 %v451
          %465 = vmatprep.subr.bf16.mxu0 0
          %466 = vmatpush1.bf16.msra.mxu0 %v450
          %467 = vmatprep.subr.bf16.mxu0 0
          %468 = vmatpush1.bf16.msra.mxu0 %v449
          %469 = vmatprep.subr.bf16.mxu0 0
          %470 = vmatpush1.bf16.msra.mxu0 %v448
          %471 = vmatprep.subr.bf16.mxu0 0
          %472 = vmatpush1.bf16.msra.mxu0 %v447
          %473 = vmatprep.subr.bf16.mxu0 0
          %474 = vmatpush1.bf16.msra.mxu0 %v446
          %475 = vmatprep.subr.bf16.mxu0 0
          %476 = vmatpush1.bf16.msra.mxu0 %v445
          %477 = vmatprep.subr.bf16.mxu0 0
          %478 = vmatpush2.bf16.msra.mxu0 0
          %479 = vmatprep.subr.bf16.mxu0 0
          %480 = vmatpush2.bf16.msra.mxu0 0
          %481 = vmatprep.subr.bf16.mxu0 0
          %482 = vmatpush2.bf16.msra.mxu0 0
          %483 = vmatprep.subr.bf16.mxu0 0
          %484 = vmatpush2.bf16.msra.mxu0 0
          %485 = vmatprep.subr.bf16.mxu0 0
          %486 = vmatpush2.bf16.msra.mxu0 0
          %487 = vmatprep.subr.bf16.mxu0 0
          %488 = vmatpush2.bf16.msra.mxu0 0
          %489 = vmatprep.subr.bf16.mxu0 0
          %490 = vmatpush2.bf16.msra.mxu0 0
          %491 = vmatprep.subr.bf16.mxu0 0
          %492 = vmatpush2.bf16.msra.mxu0 0
          %493 = vmatprep.mubr.bf16.mxu0 0
          %494 = vmatmul.mubr.bf16.gmra.mxu0 %v389
          %v495 = vpop.f32.mrf.mxu0
          %v496 = vadd.f32 %v411, %v495
          %v497 = vpop.f32.mrf.mxu0
          %v498 = vpop.f32.mrf.mxu0
          %v499 = vpop.f32.mrf.mxu0
          %500 = vdwg.mxu0
          %v501 = vpack.c.bf16 %v496, %v496
          %502 = vst [vmem:[#allocation2] sm:$0xf] %v501
          %v503 = vld [vmem:[#allocation6] sm:$0xf]
          %v504 = vld [vmem:[#allocation6 + $0x4] sm:$0xf]
          %v505 = vld [vmem:[#allocation6 + $0x8] sm:$0xf]
          %v506 = vld [vmem:[#allocation6 + $0xc] sm:$0xf]
          %v507 = vld [vmem:[#allocation6 + $0x10] sm:$0xf]
          %v508 = vld [vmem:[#allocation6 + $0x14] sm:$0xf]
          %v509 = vld [vmem:[#allocation6 + $0x18] sm:$0xf]
          %v510 = vld [vmem:[#allocation6 + $0x1c] sm:$0xf]
          %v511 = vld [vmem:[#allocation6 + $0x20] sm:$0xf]
          %v512 = vld [vmem:[#allocation6 + $0x24] sm:$0xf]
          %v513 = vld [vmem:[#allocation6 + $0x28] sm:$0xf]
          %v514 = vld [vmem:[#allocation6 + $0x2c] sm:$0xf]
          %v515 = vld [vmem:[#allocation6 + $0x30] sm:$0xf]
          %v516 = vld [vmem:[#allocation6 + $0x34] sm:$0xf]
          %v517 = vld [vmem:[#allocation6 + $0x38] sm:$0xf]
          %v518 = vld [vmem:[#allocation6 + $0x3c] sm:$0xf]
          %v519 = vld [vmem:[%s6] sm:$0x1]
          %v521 = vlaneseq
          %v522 = vshrl.u32 %v521, 7
          %v523 = vsub.s32 0, %v522
          %v524 = vrot.slane %v519, %v523
          %v542 = vunpack.c.l.b16 %v503
          %v543 = vunpack.c.l.b16 %v504
          %v544 = vunpack.c.l.b16 %v505
          %v545 = vunpack.c.l.b16 %v506
          %v546 = vunpack.c.l.b16 %v507
          %v547 = vunpack.c.l.b16 %v508
          %v548 = vunpack.c.l.b16 %v509
          %v549 = vunpack.c.l.b16 %v510
          %v550 = vunpack.c.l.b16 %v511
          %v551 = vunpack.c.l.b16 %v512
          %v552 = vunpack.c.l.b16 %v513
          %v553 = vunpack.c.l.b16 %v514
          %v554 = vunpack.c.l.b16 %v515
          %v555 = vunpack.c.l.b16 %v516
          %v556 = vunpack.c.l.b16 %v517
          %v557 = vunpack.c.l.b16 %v518
          %v558 = vpack.c.b16 %v543, %v542
          %v559 = vpack.c.b16 %v545, %v544
          %v560 = vpack.c.b16 %v547, %v546
          %v561 = vpack.c.b16 %v549, %v548
          %v562 = vpack.c.b16 %v551, %v550
          %v563 = vpack.c.b16 %v553, %v552
          %v564 = vpack.c.b16 %v555, %v554
          %v565 = vpack.c.b16 %v557, %v556
          %574 = vmatprep.subr.bf16.mxu0 0
          %575 = vmatpush1.bf16.msra.mxu0 %v565
          %576 = vmatprep.subr.bf16.mxu0 0
          %577 = vmatpush1.bf16.msra.mxu0 %v564
          %578 = vmatprep.subr.bf16.mxu0 0
          %579 = vmatpush1.bf16.msra.mxu0 %v563
          %580 = vmatprep.subr.bf16.mxu0 0
          %581 = vmatpush1.bf16.msra.mxu0 %v562
          %582 = vmatprep.subr.bf16.mxu0 0
          %583 = vmatpush1.bf16.msra.mxu0 %v561
          %584 = vmatprep.subr.bf16.mxu0 0
          %585 = vmatpush1.bf16.msra.mxu0 %v560
          %586 = vmatprep.subr.bf16.mxu0 0
          %587 = vmatpush1.bf16.msra.mxu0 %v559
          %588 = vmatprep.subr.bf16.mxu0 0
          %589 = vmatpush1.bf16.msra.mxu0 %v558
          %590 = vmatprep.subr.bf16.mxu0 0
          %591 = vmatpush2.bf16.msra.mxu0 0
          %592 = vmatprep.subr.bf16.mxu0 0
          %593 = vmatpush2.bf16.msra.mxu0 0
          %594 = vmatprep.subr.bf16.mxu0 0
          %595 = vmatpush2.bf16.msra.mxu0 0
          %596 = vmatprep.subr.bf16.mxu0 0
          %597 = vmatpush2.bf16.msra.mxu0 0
          %598 = vmatprep.subr.bf16.mxu0 0
          %599 = vmatpush2.bf16.msra.mxu0 0
          %600 = vmatprep.subr.bf16.mxu0 0
          %601 = vmatpush2.bf16.msra.mxu0 0
          %602 = vmatprep.subr.bf16.mxu0 0
          %603 = vmatpush2.bf16.msra.mxu0 0
          %604 = vmatprep.subr.bf16.mxu0 0
          %605 = vmatpush2.bf16.msra.mxu0 0
          %606 = vmatprep.mubr.bf16.mxu0 0
          %607 = vmatmul.mubr.bf16.gmra.mxu0 %v389
          %v608 = vpop.f32.mrf.mxu0
          %v609 = vadd.f32 %v524, %v608
          %v610 = vpop.f32.mrf.mxu0
          %v611 = vpop.f32.mrf.mxu0
          %v612 = vpop.f32.mrf.mxu0
          %613 = vdwg.mxu0
          %v614 = vpack.c.bf16 %v609, %v609
          %615 = vst [vmem:[#allocation3] sm:$0xf] %v614
        $region64: #{tpu_custom_call.1} parent=51 // pred_fallthru
          _
        %s616 = smul.u32 %s26, 8
        %s617 = sshra.s32 %s616, 3
        %s618 = sand.u32 %s616, 7
        %s619 = smul.addr %s617, 4
        %s620 = scalar_lea.vmem %s367, %s619
        %v621 = vld [vmem:[%s620] sm:$0xf]
        %v622 = vld [vmem:[%s1] sm:$0xf]
        %v623 = vld [vmem:[%s1 + $0x4] sm:$0xf]
        %v624 = vld [vmem:[%s1 + $0x8] sm:$0xf]
        %v625 = vld [vmem:[%s1 + $0xc] sm:$0xf]
        %v626 = vld [vmem:[%s1 + $0x10] sm:$0xf]
        %v627 = vld [vmem:[%s1 + $0x14] sm:$0xf]
        %v628 = vld [vmem:[%s1 + $0x18] sm:$0xf]
        %v629 = vld [vmem:[%s1 + $0x1c] sm:$0xf]
        %v630 = vld [vmem:[%s1 + $0x20] sm:$0xf]
        %v631 = vld [vmem:[%s1 + $0x24] sm:$0xf]
        %v632 = vld [vmem:[%s1 + $0x28] sm:$0xf]
        %v633 = vld [vmem:[%s1 + $0x2c] sm:$0xf]
        %v634 = vld [vmem:[%s1 + $0x30] sm:$0xf]
        %v635 = vld [vmem:[%s1 + $0x34] sm:$0xf]
        %v636 = vld [vmem:[%s1 + $0x38] sm:$0xf]
        %v637 = vld [vmem:[%s1 + $0x3c] sm:$0xf]
        %v638 = vld [vmem:[%s2] sm:$0x1]
        %v640 = vlaneseq
        %v641 = vshrl.u32 %v640, 7
        %v642 = vsub.s32 0, %v641
        %v643 = vrot.slane %v638, %v642
        %v661 = vunpack.c.l.b16 %v622
        %v662 = vunpack.c.l.b16 %v623
        %v663 = vunpack.c.l.b16 %v624
        %v664 = vunpack.c.l.b16 %v625
        %v665 = vunpack.c.l.b16 %v626
        %v666 = vunpack.c.l.b16 %v627
        %v667 = vunpack.c.l.b16 %v628
        %v668 = vunpack.c.l.b16 %v629
        %v669 = vunpack.c.l.b16 %v630
        %v670 = vunpack.c.l.b16 %v631
        %v671 = vunpack.c.l.b16 %v632
        %v672 = vunpack.c.l.b16 %v633
        %v673 = vunpack.c.l.b16 %v634
        %v674 = vunpack.c.l.b16 %v635
        %v675 = vunpack.c.l.b16 %v636
        %v676 = vunpack.c.l.b16 %v637
        %v677 = vpack.c.b16 %v662, %v661
        %v678 = vpack.c.b16 %v664, %v663
        %v679 = vpack.c.b16 %v666, %v665
        %v680 = vpack.c.b16 %v668, %v667
        %v681 = vpack.c.b16 %v670, %v669
        %v682 = vpack.c.b16 %v672, %v671
        %v683 = vpack.c.b16 %v674, %v673
        %v684 = vpack.c.b16 %v676, %v675
        %693 = vmatprep.subr.bf16.mxu0 0
        %694 = vmatpush1.bf16.msra.mxu0 %v684
        %695 = vmatprep.subr.bf16.mxu0 0
        %696 = vmatpush1.bf16.msra.mxu0 %v683
        %697 = vmatprep.subr.bf16.mxu0 0
        %698 = vmatpush1.bf16.msra.mxu0 %v682
        %699 = vmatprep.subr.bf16.mxu0 0
        %700 = vmatpush1.bf16.msra.mxu0 %v681
        %701 = vmatprep.subr.bf16.mxu0 0
        %702 = vmatpush1.bf16.msra.mxu0 %v680
        %703 = vmatprep.subr.bf16.mxu0 0
        %704 = vmatpush1.bf16.msra.mxu0 %v679
        %705 = vmatprep.subr.bf16.mxu0 0
        %706 = vmatpush1.bf16.msra.mxu0 %v678
        %707 = vmatprep.subr.bf16.mxu0 0
        %708 = vmatpush1.bf16.msra.mxu0 %v677
        %709 = vmatprep.subr.bf16.mxu0 0
        %710 = vmatpush2.bf16.msra.mxu0 0
        %711 = vmatprep.subr.bf16.mxu0 0
        %712 = vmatpush2.bf16.msra.mxu0 0
        %713 = vmatprep.subr.bf16.mxu0 0
        %714 = vmatpush2.bf16.msra.mxu0 0
        %715 = vmatprep.subr.bf16.mxu0 0
        %716 = vmatpush2.bf16.msra.mxu0 0
        %717 = vmatprep.subr.bf16.mxu0 0
        %718 = vmatpush2.bf16.msra.mxu0 0
        %719 = vmatprep.subr.bf16.mxu0 0
        %720 = vmatpush2.bf16.msra.mxu0 0
        %721 = vmatprep.subr.bf16.mxu0 0
        %722 = vmatpush2.bf16.msra.mxu0 0
        %723 = vmatprep.subr.bf16.mxu0 0
        %724 = vmatpush2.bf16.msra.mxu0 0
        %725 = vmatprep.mubr.bf16.mxu0 0
        %726 = vmatmul.mubr.bf16.gmra.mxu0 %v621
        %v727 = vpop.f32.mrf.mxu0
        %v728 = vadd.f32 %v643, %v727
        %v729 = vpop.f32.mrf.mxu0
        %v730 = vpop.f32.mrf.mxu0
        %v731 = vpop.f32.mrf.mxu0
        %732 = vdwg.mxu0
        %v733 = vpack.c.bf16 %v728, %v728
        %v734 = vld [vmem:[#allocation2] sm:$0xf]
        %735 = vmatprep.subr.bf16.mxu0 0
        %736 = vmatpush1.bf16.xpose.msra.mxu0 0
        %737 = vmatprep.subr.bf16.mxu0 0
        %738 = vmatpush1.bf16.xpose.msra.mxu0 0
        %739 = vmatprep.subr.bf16.mxu0 0
        %740 = vmatpush1.bf16.xpose.msra.mxu0 0
        %741 = vmatprep.subr.bf16.mxu0 0
        %742 = vmatpush1.bf16.xpose.msra.mxu0 0
        %743 = vmatprep.subr.bf16.mxu0 0
        %744 = vmatpush1.bf16.xpose.msra.mxu0 0
        %745 = vmatprep.subr.bf16.mxu0 0
        %746 = vmatpush1.bf16.xpose.msra.mxu0 0
        %747 = vmatprep.subr.bf16.mxu0 0
        %748 = vmatpush1.bf16.xpose.msra.mxu0 0
        %749 = vmatprep.subr.bf16.mxu0 0
        %750 = vmatpush1.bf16.xpose.msra.mxu0 %v734
        %751 = vmatprep.subr.bf16.mxu0 0
        %752 = vmatpush2.bf16.xpose.msra.mxu0 0
        %753 = vmatprep.subr.bf16.mxu0 0
        %754 = vmatpush2.bf16.xpose.msra.mxu0 0
        %755 = vmatprep.subr.bf16.mxu0 0
        %756 = vmatpush2.bf16.xpose.msra.mxu0 0
        %757 = vmatprep.subr.bf16.mxu0 0
        %758 = vmatpush2.bf16.xpose.msra.mxu0 0
        %759 = vmatprep.subr.bf16.mxu0 0
        %760 = vmatpush2.bf16.xpose.msra.mxu0 0
        %761 = vmatprep.subr.bf16.mxu0 0
        %762 = vmatpush2.bf16.xpose.msra.mxu0 0
        %763 = vmatprep.subr.bf16.mxu0 0
        %764 = vmatpush2.bf16.xpose.msra.mxu0 0
        %765 = vmatprep.subr.bf16.mxu0 0
        %766 = vmatpush2.bf16.xpose.msra.mxu0 0
        %767 = vmatprep.mubr.bf16.mxu0 0
        %768 = vmatmul.mubr.bf16.gmra.mxu0 %v733
        %v769 = vpop.f32.mrf.mxu0
        %v770 = vadd.f32 0.0, %v769
        %v771 = vpop.f32.mrf.mxu0
        %v772 = vpop.f32.mrf.mxu0
        %v773 = vpop.f32.mrf.mxu0
        %774 = vdwg.mxu0
        %vm775 = vcmask 64512
        %v776 = vsel %vm775, %v770, -inf
        %777 = vmax.xlane.f32.xlu0 %v776
        %v778 = vpop.xlane.xlu0 %777
        %v779 = vsub.f32 %v770, %v778
        %v780 = vmul.f32 %v779, 1.442695
        %v781 = vpow.pop %v780
        %v782 = vsel %vm775, %v781, 0.0
        %783 = vadd.xlane.f32.xlu0 %v782
        %v784 = vpop.xlane.xlu0 %783
        %v785 = vrcp.pop %v784
        %v786 = vmul.f32 %v781, %v785
        %v787 = vpack.c.bf16 %v786, %v786
        %v788 = vld [vmem:[#allocation3] sm:$0xf]
        %789 = vxpose.xlu0.c.b16.start [1/8] %v788, 128
        %790 = vxpose.xlu0.c.b16.cont [2/8] 0, 128
        %791 = vxpose.xlu0.c.b16.cont [3/8] 0, 128
        %792 = vxpose.xlu0.c.b16.cont [4/8] 0, 128
        %793 = vxpose.xlu0.c.b16.cont [5/8] 0, 128
        %794 = vxpose.xlu0.c.b16.cont [6/8] 0, 128
        %795 = vxpose.xlu0.c.b16.cont [7/8] 0, 128
        %796 = vxpose.xlu0.c.b16.end [8/8] 0, 128
        %v797 = vpop.trf.xlu0
        %v798 = vpop.trf.xlu0
        %v799 = vpop.trf.xlu0
        %v800 = vpop.trf.xlu0
        %v801 = vpop.trf.xlu0
        %v802 = vpop.trf.xlu0
        %v803 = vpop.trf.xlu0
        %v804 = vpop.trf.xlu0
        %v806 = vsel %vm775, %v797, 0
        %v809 = vsel %vm775, %v798, 0
        %v812 = vsel %vm775, %v799, 0
        %v815 = vsel %vm775, %v800, 0
        %v818 = vsel %vm775, %v801, 0
        %v821 = vsel %vm775, %v802, 0
        %v824 = vsel %vm775, %v803, 0
        %v827 = vsel %vm775, %v804, 0
        %v830 = vsel %vm775, %v787, 0
        %832 = vmatprep.subr.bf16.mxu0 0
        %833 = vmatpush1.bf16.xpose.msra.mxu0 0
        %834 = vmatprep.subr.bf16.mxu0 0
        %835 = vmatpush1.bf16.xpose.msra.mxu0 0
        %836 = vmatprep.subr.bf16.mxu0 0
        %837 = vmatpush1.bf16.xpose.msra.mxu0 0
        %838 = vmatprep.subr.bf16.mxu0 0
        %839 = vmatpush1.bf16.xpose.msra.mxu0 0
        %840 = vmatprep.subr.bf16.mxu0 0
        %841 = vmatpush1.bf16.xpose.msra.mxu0 0
        %842 = vmatprep.subr.bf16.mxu0 0
        %843 = vmatpush1.bf16.xpose.msra.mxu0 0
        %844 = vmatprep.subr.bf16.mxu0 0
        %845 = vmatpush1.bf16.xpose.msra.mxu0 0
        %846 = vmatprep.subr.bf16.mxu0 0
        %847 = vmatpush1.bf16.xpose.msra.mxu0 %v830
        %848 = vmatprep.subr.bf16.mxu0 0
        %849 = vmatpush2.bf16.xpose.msra.mxu0 0
        %850 = vmatprep.subr.bf16.mxu0 0
        %851 = vmatpush2.bf16.xpose.msra.mxu0 0
        %852 = vmatprep.subr.bf16.mxu0 0
        %853 = vmatpush2.bf16.xpose.msra.mxu0 0
        %854 = vmatprep.subr.bf16.mxu0 0
        %855 = vmatpush2.bf16.xpose.msra.mxu0 0
        %856 = vmatprep.subr.bf16.mxu0 0
        %857 = vmatpush2.bf16.xpose.msra.mxu0 0
        %858 = vmatprep.subr.bf16.mxu0 0
        %859 = vmatpush2.bf16.xpose.msra.mxu0 0
        %860 = vmatprep.subr.bf16.mxu0 0
        %861 = vmatpush2.bf16.xpose.msra.mxu0 0
        %862 = vmatprep.subr.bf16.mxu0 0
        %863 = vmatpush2.bf16.xpose.msra.mxu0 0
        %864 = vmatprep.mubr.bf16.mxu0 0
        %865 = vmatmul.mubr.bf16.gmra.mxu0 %v806
        %v866 = vpop.f32.mrf.mxu0
        %v867 = vadd.f32 0.0, %v866
        %v868 = vpop.f32.mrf.mxu0
        %v869 = vpop.f32.mrf.mxu0
        %v870 = vadd.f32 0.0, %v869
        %v871 = vpop.f32.mrf.mxu0
        %872 = vmatprep.mubr.bf16.mxu0 0
        %873 = vmatmul.mubr.bf16.gmra.mxu0 %v809
        %v874 = vpop.f32.mrf.mxu0
        %v875 = vadd.f32 0.0, %v874
        %v876 = vpop.f32.mrf.mxu0
        %v877 = vpop.f32.mrf.mxu0
        %v878 = vadd.f32 0.0, %v877
        %v879 = vpop.f32.mrf.mxu0
        %880 = vmatprep.mubr.bf16.mxu0 0
        %881 = vmatmul.mubr.bf16.gmra.mxu0 %v812
        %v882 = vpop.f32.mrf.mxu0
        %v883 = vpop.f32.mrf.mxu0
        %v884 = vpop.f32.mrf.mxu0
        %v885 = vpop.f32.mrf.mxu0
        %886 = vmatprep.mubr.bf16.mxu0 0
        %887 = vmatmul.mubr.bf16.gmra.mxu0 %v815
        %v888 = vpop.f32.mrf.mxu0
        %v889 = vpop.f32.mrf.mxu0
        %v890 = vpop.f32.mrf.mxu0
        %v891 = vpop.f32.mrf.mxu0
        %892 = vmatprep.mubr.bf16.mxu0 0
        %893 = vmatmul.mubr.bf16.gmra.mxu0 %v818
        %v894 = vpop.f32.mrf.mxu0
        %v895 = vpop.f32.mrf.mxu0
        %v896 = vpop.f32.mrf.mxu0
        %v897 = vpop.f32.mrf.mxu0
        %898 = vmatprep.mubr.bf16.mxu0 0
        %899 = vmatmul.mubr.bf16.gmra.mxu0 %v821
        %v900 = vpop.f32.mrf.mxu0
        %v901 = vpop.f32.mrf.mxu0
        %v902 = vpop.f32.mrf.mxu0
        %v903 = vpop.f32.mrf.mxu0
        %904 = vmatprep.mubr.bf16.mxu0 0
        %905 = vmatmul.mubr.bf16.gmra.mxu0 %v824
        %v906 = vpop.f32.mrf.mxu0
        %v907 = vpop.f32.mrf.mxu0
        %v908 = vpop.f32.mrf.mxu0
        %v909 = vpop.f32.mrf.mxu0
        %910 = vmatprep.mubr.bf16.mxu0 0
        %911 = vmatmul.mubr.bf16.gmra.mxu0 %v827
        %v912 = vpop.f32.mrf.mxu0
        %v913 = vpop.f32.mrf.mxu0
        %v914 = vpop.f32.mrf.mxu0
        %v915 = vpop.f32.mrf.mxu0
        %916 = vdwg.mxu0
        %v917 = vld [vmem:[%s375] sm:$0xff]
        %v918 = vld [vmem:[%s375 + $0x8] sm:$0xff]
        %v919 = vld [vmem:[%s375 + $0x10] sm:$0xff]
        %v920 = vld [vmem:[%s375 + $0x18] sm:$0xff]
        %v921 = vadd.f32 %v867, %v917
        %v922 = vadd.f32 %v870, %v918
        %v923 = vadd.f32 %v875, %v919
        %v924 = vadd.f32 %v878, %v920
        %925 = vst.msk [vmem:[%s383] sm:$0xff] %vm775, %v921
        %926 = vst.msk [vmem:[%s383 + $0x8] sm:$0xff] %vm775, %v922
        %927 = vst.msk [vmem:[%s383 + $0x10] sm:$0xff] %vm775, %v923
        %928 = vst.msk [vmem:[%s383 + $0x18] sm:$0xff] %vm775, %v924
        %p929 = scmp.lt.s32.totalorder %s25, 1
        %s930 = scalar_select %p929, %s25, 1
        %p931 = scmp.lt.s32.totalorder %s26, 0
        %s932 = scalar_select %p931, %s26, 0
        %s933 = smul.addr %s930, 4
        %s934 = sadd.s32 %s932, %s933
        %s935 = smul.addr %s934, 8
        %s936 = scalar_lea.vmem %s8, %s935
        // Predicated region
        $region65: #{tpu_custom_call.1} parent=51 // pred_check
          %p937 = pneg %p233
        $region66: #{tpu_custom_call.1} parent=51 // pred_check_branch
          %939 = sbr.rel (%p937) target = $region68
        $region67: #{tpu_custom_call.1} parent=51 // pred_region
          _
        $region68: #{tpu_custom_call.1} parent=51 // pred_fallthru
          _
      $region52: #{tpu_custom_call.1} parent=5 // pred_fallthru
        _
      %p940 = scmp.le.s32.totalorder 2, %s16
      // Predicated region
      $region69: #{tpu_custom_call.1} parent=5 // pred_check
        %p941 = pneg %p940
      $region70: #{tpu_custom_call.1} parent=5 // pred_check_branch
        %943 = sbr.rel (%p941) target = $region72
      $region71: #{tpu_custom_call.1} parent=5 // pred_region
        %s944 = ssub.s32 %s16, 2
        // Predicated region
        $region73: #{tpu_custom_call.1} parent=71 // pred_check
          %p945 = pneg %p239
        $region74: #{tpu_custom_call.1} parent=71 // pred_check_branch
          %947 = sbr.rel (%p945) target = $region76
        $region75: #{tpu_custom_call.1} parent=71 // pred_region
          %p948 = scmp.lt.s32.totalorder %s27, 1
          %s949 = scalar_select %p948, %s27, 1
          %p950 = scmp.lt.s32.totalorder %s28, 0
          %s951 = scalar_select %p950, %s28, 0
          %s952 = smul.addr %s949, 4
          %s953 = sadd.s32 %s951, %s952
          %s954 = smul.addr %s953, 8
          %s955 = scalar_lea.vmem %s8, %s954
        $region76: #{tpu_custom_call.1} parent=71 // pred_fallthru
          _
      $region72: #{tpu_custom_call.1} parent=5 // pred_fallthru
        _
    $region6: #{tpu_custom_call.1} parent=1 // loop_footer
      %s20 = sadd.s32 1, %s16
    $region7: #{tpu_custom_call.1} parent=1 // loop_footer_branch
      %15 = sbr.rel target = $region3
    $region8: #{tpu_custom_call.1} parent=1 // loop_exit
      _
    %956 = vsyncpa [#allocation5], 1
    %s957 = scalar_lea.sflag [#allocation5], 1
    %958 = vsyncpa %s957, 1
    %959 = vsyncpa [#allocation7], 1

</llo_original>
